<compile_context>
chip_gen: v5e
topology: v5e:2x2
jax: 0.10.0
libtpu: 0.0.40
codegen_flags: <defaults>
</compile_context>

<pallas_src>
import jax
import jax.numpy as jnp
from jax.experimental import pallas as pl
from jax.experimental.pallas import tpu as pltpu


def _round_up(x, m):
    return (x + m - 1) // m * m


def _pad_to(a, shape, dtype):
    """Zero-pad `a` (cast to `dtype`) up to `shape`; no copy if already there."""
    a = a.astype(dtype)
    if tuple(a.shape) == tuple(shape):
        return a
    out = jnp.zeros(shape, dtype)
    return out.at[tuple(slice(0, s) for s in a.shape)].set(a)


def _lora_linear_kernel(x_ref, w_ref, b_ref, wa_ref, wb_ref, o_ref,
                        acc_ref, xa_ref):
    """Grid = (M//tm, N//tn, K//tk), K innermost (reduction axis).

    x_ref  : [tm, tk]    bf16
    w_ref  : [tk, tn]    bf16   (W^T tile)
    b_ref  : [1,  tn]    f32
    wa_ref : [tk, R_pad] bf16
    wb_ref : [R_pad, tn] bf16   (alpha already folded in)
    o_ref  : [tm, tn]    output dtype
    acc_ref: [tm, tn]    f32 scratch (base matmul accumulator)
    xa_ref : [tm, R_pad] f32 scratch (x @ W_a accumulator)
    """
    k = pl.program_id(2)

    @pl.when(k == 0)
    def _():
        acc_ref[...] = jnp.zeros_like(acc_ref)
        xa_ref[...] = jnp.zeros_like(xa_ref)

    x = x_ref[...]
    acc_ref[...] += jnp.dot(x, w_ref[...], preferred_element_type=jnp.float32)
    xa_ref[...] += jnp.dot(x, wa_ref[...], preferred_element_type=jnp.float32)

    @pl.when(k == pl.num_programs(2) - 1)
    def _():
        # Tiny rank-R matmul + bias add, once per output tile, all in f32.
        lora = jnp.dot(xa_ref[...], wb_ref[...].astype(jnp.float32),
                       preferred_element_type=jnp.float32)
        o_ref[...] = (acc_ref[...] + b_ref[...] + lora).astype(o_ref.dtype)


def linear_with_lora(x, w, b, w_a, w_b, alpha, *,
                     tm_cap=256, tn_cap=256, tk_cap=512,
                     compute_dtype=jnp.bfloat16):
    """forward(x) = x @ W^T + b + alpha * ((x @ W_a) @ W_b)

    x   : [M, K]   (K = in_features)
    w   : [N, K]   PyTorch nn.Linear weight layout (out_features, in_features)
    b   : [N]
    w_a : [K, R]
    w_b : [R, N]
    """
    M, K = x.shape
    N = w.shape[0]
    R = w_a.shape[1]
    out_dtype = x.dtype

    # ---- tile sizes (all (8, 128)-aligned; shrink to the problem if small) --
    tm = min(tm_cap, _round_up(M, 8))
    tn = min(tn_cap, _round_up(N, 128))
    tk = min(tk_cap, _round_up(K, 128))

    M_pad = _round_up(M, tm)
    N_pad = _round_up(N, tn)
    K_pad = _round_up(K, tk)
    R_pad = _round_up(R, 8)

    # ---- parameter / input prep (the weight transform is one-time in real
    # use): transpose W to [K, N], fold alpha into W_b, zero-pad to
    # tile-aligned shapes, cast matmul operands to bf16, keep bias f32.
    # Zero padding is exact: padded K rows/cols and padded rank rows
    # contribute nothing; padded N columns are sliced off at the end. -------
    x_p = _pad_to(x, (M_pad, K_pad), compute_dtype)
    w_t = _pad_to(w.T, (K_pad, N_pad), compute_dtype)
    b_p = _pad_to(b.astype(jnp.float32).reshape(1, N), (1, N_pad), jnp.float32)
    wa_p = _pad_to(w_a, (K_pad, R_pad), compute_dtype)
    wb_p = _pad_to((jnp.float32(alpha) * w_b.astype(jnp.float32)),
                   (R_pad, N_pad), compute_dtype)

    grid = (M_pad // tm, N_pad // tn, K_pad // tk)

    itemsize = jnp.dtype(compute_dtype).itemsize
    flops = 2 * M * K * N + 2 * M * K * R + 2 * M * R * N
    bytes_accessed = (x_p.size * itemsize + w_t.size * itemsize
                      + wa_p.size * itemsize + wb_p.size * itemsize
                      + b_p.size * 4
                      + M_pad * N_pad * jnp.dtype(out_dtype).itemsize)

    out_padded = pl.pallas_call(
        _lora_linear_kernel,
        out_shape=jax.ShapeDtypeStruct((M_pad, N_pad), out_dtype),
        grid_spec=pltpu.PrefetchScalarGridSpec(
            num_scalar_prefetch=0,
            grid=grid,
            in_specs=[
                pl.BlockSpec((tm, tk), lambda i, j, k: (i, k)),     # x
                pl.BlockSpec((tk, tn), lambda i, j, k: (k, j)),     # W^T
                pl.BlockSpec((1, tn), lambda i, j, k: (0, j)),      # bias
                pl.BlockSpec((tk, R_pad), lambda i, j, k: (k, 0)),  # W_a
                pl.BlockSpec((R_pad, tn), lambda i, j, k: (0, j)),  # alpha*W_b
            ],
            out_specs=pl.BlockSpec((tm, tn), lambda i, j, k: (i, j)),
            scratch_shapes=[
                pltpu.VMEM((tm, tn), jnp.float32),     # base accumulator
                pltpu.VMEM((tm, R_pad), jnp.float32),  # x @ W_a accumulator
            ],
        ),
        compiler_params=pltpu.CompilerParams(
            dimension_semantics=("parallel", "parallel", "arbitrary")),
        cost_estimate=pl.CostEstimate(
            flops=flops, transcendentals=0, bytes_accessed=bytes_accessed),
    )(x_p, w_t, b_p, wa_p, wb_p)

    if (M_pad, N_pad) != (M, N):
        return out_padded[:M, :N]
    return out_padded


if __name__ == "__main__":
    # Small shapes consistent with the module's forward.
    B, IN, OUT, RANK = 8, 32, 64, 4
    ALPHA = 8.0

    key = jax.random.PRNGKey(0)
    k_x, k_w, k_b, k_wa, k_wb = jax.random.split(key, 5)

    x = jax.random.normal(k_x, (B, IN), dtype=jnp.float32)

    # nn.Linear params, weight stored [out, in] like PyTorch.
    w = jax.random.normal(k_w, (OUT, IN), dtype=jnp.float32) / jnp.sqrt(
        jnp.float32(IN))
    b = jax.random.normal(k_b, (OUT,), dtype=jnp.float32) * 0.1

    # LoRALayer init: W_a = randn(in, rank)/sqrt(rank), W_b = zeros(rank, out);
    # a random W_b is used here so the LoRA path is actually exercised.
    std_dev = 1.0 / jnp.sqrt(jnp.float32(RANK))
    w_a = jax.random.normal(k_wa, (IN, RANK), dtype=jnp.float32) * std_dev
    w_b = jax.random.normal(k_wb, (RANK, OUT), dtype=jnp.float32) * 0.05

    out = jax.block_until_ready(linear_with_lora(x, w, b, w_a, w_b, ALPHA))
    assert out.shape == (B, OUT)

    # Reference mirroring the kernel's numerics (bf16 matmul operands,
    # f32 accumulation / bias / alpha fold).
    f32 = jnp.float32
    xb = x.astype(jnp.bfloat16).astype(f32)
    wtb = w.T.astype(jnp.bfloat16).astype(f32)
    wab = w_a.astype(jnp.bfloat16).astype(f32)
    wbb = (ALPHA * w_b).astype(jnp.bfloat16).astype(f32)
    ref = xb @ wtb + b + (xb @ wab) @ wbb
    assert jnp.allclose(out, ref, atol=1e-3, rtol=1e-3), float(
        jnp.max(jnp.abs(out - ref)))

    print("KERNEL_OK")
</pallas_src>

<mosaic_0001>
module attributes {stable_mosaic.version = 11 : i64} {
  func.func @_lora_linear_kernel(%arg0: i32, %arg1: i32, %arg2: i32, %arg3: memref<8x128xbf16, #tpu.memory_space<vmem>>, %arg4: memref<128x128xbf16, #tpu.memory_space<vmem>>, %arg5: memref<1x128xf32, #tpu.memory_space<vmem>>, %arg6: memref<128x8xbf16, #tpu.memory_space<vmem>>, %arg7: memref<8x128xbf16, #tpu.memory_space<vmem>>, %arg8: memref<8x128xf32, #tpu.memory_space<vmem>>, %arg9: memref<8x128xf32, #tpu.memory_space<vmem>>, %arg10: memref<8x8xf32, #tpu.memory_space<vmem>>) attributes {dimension_semantics = [#tpu.dimension_semantics<parallel>, #tpu.dimension_semantics<parallel>, #tpu.dimension_semantics<arbitrary>], iteration_bounds = array<i64: 1, 1, 1>, scalar_prefetch = 0 : i64, scratch_operands = 2 : i64, tpu.core_type = #tpu.core_type<tc>, window_params = [{transform_indices = @transform_0, window_bounds = array<i64: 8, 128>}, {transform_indices = @transform_1, window_bounds = array<i64: 128, 128>}, {transform_indices = @transform_2, window_bounds = array<i64: 1, 128>}, {transform_indices = @transform_3, window_bounds = array<i64: 128, 8>}, {transform_indices = @transform_4, window_bounds = array<i64: 8, 128>}, {transform_indices = @transform_5, window_bounds = array<i64: 8, 128>}]} {
    %c0_i32 = arith.constant 0 : i32
    %0 = arith.cmpi eq, %arg2, %c0_i32 : i32
    %1 = arith.extui %0 : i1 to i32
    %c0_i32_0 = arith.constant 0 : i32
    %2 = arith.cmpi ne, %1, %c0_i32_0 : i32
    scf.if %2 {
      %cst_17 = arith.constant 0.000000e+00 : f32
      %17 = vector.broadcast %cst_17 : f32 to vector<8x128xf32>
      %c0_18 = arith.constant 0 : index
      %c0_19 = arith.constant 0 : index
      %18 = vector.load %arg9[%c0_18, %c0_19] : memref<8x128xf32, #tpu.memory_space<vmem>>, vector<8x128xf32>
      tpu.vector_store %arg9[%c0_18, %c0_19], %17 {strides = array<i32>} : memref<8x128xf32, #tpu.memory_space<vmem>>, vector<8x128xf32>,
      %cst_20 = arith.constant 0.000000e+00 : f32
      %19 = vector.broadcast %cst_20 : f32 to vector<8x8xf32>
      %c0_21 = arith.constant 0 : index
      %c0_22 = arith.constant 0 : index
      %20 = vector.load %arg10[%c0_21, %c0_22] : memref<8x8xf32, #tpu.memory_space<vmem>>, vector<8x8xf32>
      tpu.vector_store %arg10[%c0_21, %c0_22], %19 {strides = array<i32>} : memref<8x8xf32, #tpu.memory_space<vmem>>, vector<8x8xf32>,
    } else {
    }
    %c0 = arith.constant 0 : index
    %c0_1 = arith.constant 0 : index
    %3 = vector.load %arg3[%c0, %c0_1] : memref<8x128xbf16, #tpu.memory_space<vmem>>, vector<8x128xbf16>
    %c0_2 = arith.constant 0 : index
    %c0_3 = arith.constant 0 : index
    %4 = vector.load %arg9[%c0_2, %c0_3] : memref<8x128xf32, #tpu.memory_space<vmem>>, vector<8x128xf32>
    %c0_4 = arith.constant 0 : index
    %c0_5 = arith.constant 0 : index
    %5 = vector.load %arg4[%c0_4, %c0_5] : memref<128x128xbf16, #tpu.memory_space<vmem>>, vector<128x128xbf16>
    %cst = arith.constant dense<0.000000e+00> : vector<8x128xf32>
    %6 = tpu.matmul %3, %5, %cst {dimension_numbers = #tpu.dot_dimension_numbers<[1], [0], [0], [1], [0, 0, 1, 1], [], []>} : vector<8x128xbf16>, vector<128x128xbf16>, vector<8x128xf32> -> vector<8x128xf32>
    %7 = arith.addf %4, %6 : vector<8x128xf32>
    %c0_6 = arith.constant 0 : index
    %c0_7 = arith.constant 0 : index
    %8 = vector.load %arg9[%c0_6, %c0_7] : memref<8x128xf32, #tpu.memory_space<vmem>>, vector<8x128xf32>
    tpu.vector_store %arg9[%c0_6, %c0_7], %7 {strides = array<i32>} : memref<8x128xf32, #tpu.memory_space<vmem>>, vector<8x128xf32>,
    %c0_8 = arith.constant 0 : index
    %c0_9 = arith.constant 0 : index
    %9 = vector.load %arg10[%c0_8, %c0_9] : memref<8x8xf32, #tpu.memory_space<vmem>>, vector<8x8xf32>
    %c0_10 = arith.constant 0 : index
    %c0_11 = arith.constant 0 : index
    %10 = vector.load %arg6[%c0_10, %c0_11] : memref<128x8xbf16, #tpu.memory_space<vmem>>, vector<128x8xbf16>
    %cst_12 = arith.constant dense<0.000000e+00> : vector<8x8xf32>
    %11 = tpu.matmul %3, %10, %cst_12 {dimension_numbers = #tpu.dot_dimension_numbers<[1], [0], [0], [1], [0, 0, 1, 1], [], []>} : vector<8x128xbf16>, vector<128x8xbf16>, vector<8x8xf32> -> vector<8x8xf32>
    %12 = arith.addf %9, %11 : vector<8x8xf32>
    %c0_13 = arith.constant 0 : index
    %c0_14 = arith.constant 0 : index
    %13 = vector.load %arg10[%c0_13, %c0_14] : memref<8x8xf32, #tpu.memory_space<vmem>>, vector<8x8xf32>
    tpu.vector_store %arg10[%c0_13, %c0_14], %12 {strides = array<i32>} : memref<8x8xf32, #tpu.memory_space<vmem>>, vector<8x8xf32>,
    %c0_i32_15 = arith.constant 0 : i32
    %14 = arith.cmpi eq, %arg2, %c0_i32_15 : i32
    %15 = arith.extui %14 : i1 to i32
    %c0_i32_16 = arith.constant 0 : i32
    %16 = arith.cmpi ne, %15, %c0_i32_16 : i32
    scf.if %16 {
      %c0_17 = arith.constant 0 : index
      %c0_18 = arith.constant 0 : index
      %17 = vector.load %arg10[%c0_17, %c0_18] : memref<8x8xf32, #tpu.memory_space<vmem>>, vector<8x8xf32>
      %c0_19 = arith.constant 0 : index
      %c0_20 = arith.constant 0 : index
      %18 = vector.load %arg7[%c0_19, %c0_20] : memref<8x128xbf16, #tpu.memory_space<vmem>>, vector<8x128xbf16>
      %19 = arith.extf %18 : vector<8x128xbf16> to vector<8x128xf32>
      %cst_21 = arith.constant dense<0.000000e+00> : vector<8x128xf32>
      %20 = tpu.matmul %17, %19, %cst_21 {dimension_numbers = #tpu.dot_dimension_numbers<[1], [0], [0], [1], [0, 0, 1, 1], [], []>} : vector<8x8xf32>, vector<8x128xf32>, vector<8x128xf32> -> vector<8x128xf32>
      %c0_22 = arith.constant 0 : index
      %c0_23 = arith.constant 0 : index
      %21 = vector.load %arg9[%c0_22, %c0_23] : memref<8x128xf32, #tpu.memory_space<vmem>>, vector<8x128xf32>
      %c0_24 = arith.constant 0 : index
      %c0_25 = arith.constant 0 : index
      %22 = vector.load %arg5[%c0_24, %c0_25] : memref<1x128xf32, #tpu.memory_space<vmem>>, vector<1x128xf32>
      %23 = vector.broadcast %22 : vector<1x128xf32> to vector<8x128xf32>
      %24 = arith.addf %21, %23 : vector<8x128xf32>
      %25 = arith.addf %24, %20 : vector<8x128xf32>
      %c0_26 = arith.constant 0 : index
      %c0_27 = arith.constant 0 : index
      %26 = vector.load %arg8[%c0_26, %c0_27] : memref<8x128xf32, #tpu.memory_space<vmem>>, vector<8x128xf32>
      tpu.vector_store %arg8[%c0_26, %c0_27], %25 {strides = array<i32>} : memref<8x128xf32, #tpu.memory_space<vmem>>, vector<8x128xf32>,
    } else {
    }
    return
  }
  func.func @transform_0(%arg0: i32, %arg1: i32, %arg2: i32) -> (i32, i32) {
    %c0_i32 = arith.constant 0 : i32
    return %arg0, %arg2 : i32, i32
  }
  func.func @transform_1(%arg0: i32, %arg1: i32, %arg2: i32) -> (i32, i32) {
    %c0_i32 = arith.constant 0 : i32
    return %arg2, %arg1 : i32, i32
  }
  func.func @transform_2(%arg0: i32, %arg1: i32, %arg2: i32) -> (i32, i32) {
    %c0_i32 = arith.constant 0 : i32
    %c0_i32_0 = arith.constant 0 : i32
    return %c0_i32, %arg1 : i32, i32
  }
  func.func @transform_3(%arg0: i32, %arg1: i32, %arg2: i32) -> (i32, i32) {
    %c0_i32 = arith.constant 0 : i32
    %c0_i32_0 = arith.constant 0 : i32
    return %arg2, %c0_i32 : i32, i32
  }
  func.func @transform_4(%arg0: i32, %arg1: i32, %arg2: i32) -> (i32, i32) {
    %c0_i32 = arith.constant 0 : i32
    %c0_i32_0 = arith.constant 0 : i32
    return %c0_i32, %arg1 : i32, i32
  }
  func.func @transform_5(%arg0: i32, %arg1: i32, %arg2: i32) -> (i32, i32) {
    %c0_i32 = arith.constant 0 : i32
    return %arg0, %arg1 : i32, i32
  }
}

</mosaic_0001>

<llo_original>
// kernel: tpu_custom_call.1
$region0: #{tpu_custom_call.1}
  #allocation0 [shape = 'u32[]', space=smem, size = 0x4, offset = 0x4, fixed_abs, tag = 'smem constant byte address 0x4 - core index']
  #allocation1 [shape = 'u32[72,128]{1,0:T(1,128)}', space=vmem, size = 0x9000, scoped, tag = 'internal scratch']
  #allocation2 [shape = 'f32[8,128]{1,0:T(8,128)}', space=vmem, size = 0x1000, scoped, tag = 'scratch operand']
  #allocation3 [shape = 'f32[8,8]{1,0:T(8,128)}', space=vmem, size = 0x1000, scoped, tag = 'scratch operand']
  %s0 = inlined_call_operand.vmem [shape: bf16[8,128], index: 0, kind: input, shape index: {}]
  %s1 = inlined_call_operand.vmem [shape: bf16[128,128], index: 1, kind: input, shape index: {}]
  %s2 = inlined_call_operand.vmem [shape: f32[1,128], index: 2, kind: input, shape index: {}]
  %s3 = inlined_call_operand.vmem [shape: bf16[128,8], index: 3, kind: input, shape index: {}]
  %s4 = inlined_call_operand.hbm [shape: bf16[8,128], index: 4, kind: input, shape index: {}]
  %s5 = inlined_call_operand.hbm [shape: f32[8,128], index: 5, kind: output, shape index: {}]
  %s6 = sld [smem:[#allocation0]]
  $region42: #{tpu_custom_call.1} parent=0
    _
  %s8 = ssub.s32 1, %s6
  %s9 = scalar_select 0, %s8, %s6
  $region1: #{tpu_custom_call.1} parent=0
    #allocation4 [shape = 'u8[2048]{0}', space=vmem, size = 0x800, scoped, tag = 'input window, operand 4, single buffered']
    #allocation5 [shape = 's32[1]{0}', space=sflag, size = 0x4, scoped, tag = 'scoped memory for tpu_custom_call.1']
    #allocation6 [shape = 's32[1]{0}', space=sflag, size = 0x4, scoped, tag = 'scoped memory for tpu_custom_call.1']
    #allocation7 [shape = 'u8[4096]{0}', space=vmem, size = 0x1000, scoped, tag = 'output window, operand 0, single buffered']
    %10 = vsyncpa [#allocation5], 0
    %11 = vsyncpa [#allocation6], 0
    // Predicated region
    $region2: #{tpu_custom_call.1} parent=1 // pred_check
      _
    $region3: #{tpu_custom_call.1} parent=1 // pred_check_branch
      %13 = sbr.rel (0) target = $region5
    $region4: #{tpu_custom_call.1} parent=1 // pred_region
      _
    $region5: #{tpu_custom_call.1} parent=1 // pred_fallthru
      _
    // Predicated region
    $region6: #{tpu_custom_call.1} parent=1 // pred_check
      _
    $region7: #{tpu_custom_call.1} parent=1 // pred_check_branch
      %15 = sbr.rel (0) target = $region9
    $region8: #{tpu_custom_call.1} parent=1 // pred_region
      _
    $region9: #{tpu_custom_call.1} parent=1 // pred_fallthru
      _
    // Predicated region
    $region10: #{tpu_custom_call.1} parent=1 // pred_check
      _
    $region11: #{tpu_custom_call.1} parent=1 // pred_check_branch
      %17 = sbr.rel (0) target = $region13
    $region12: #{tpu_custom_call.1} parent=1 // pred_region
      _
    $region13: #{tpu_custom_call.1} parent=1 // pred_fallthru
      _
    // Predicated region
    $region14: #{tpu_custom_call.1} parent=1 // pred_check
      _
    $region15: #{tpu_custom_call.1} parent=1 // pred_check_branch
      %19 = sbr.rel (0) target = $region17
    $region16: #{tpu_custom_call.1} parent=1 // pred_region
      _
    $region17: #{tpu_custom_call.1} parent=1 // pred_fallthru
      _
    // Predicated region
    $region18: #{tpu_custom_call.1} parent=1 // pred_check
      _
    $region19: #{tpu_custom_call.1} parent=1 // pred_check_branch
      %21 = sbr.rel (0) target = $region21
    $region20: #{tpu_custom_call.1} parent=1 // pred_region
      %23 = vsyncadd [#allocation5], 0
      %s25 = sshll.u32 %s4, 4
      %s26 = int_to_ptr.hbm [resolvable:$true] %s25
      %s27 = sshll.u32 [#allocation4], 4
      %s28 = int_to_ptr.vmem [resolvable:$true] %s27
      %30 = dma.hbm_to_vmem [thread:$0]  %s26, 64, %s28, [#allocation5]
    $region21: #{tpu_custom_call.1} parent=1 // pred_fallthru
      _
    // Predicated region
    $region22: #{tpu_custom_call.1} parent=1 // pred_check
      _
    $region23: #{tpu_custom_call.1} parent=1 // pred_check_branch
      %32 = sbr.rel (0) target = $region25
    $region24: #{tpu_custom_call.1} parent=1 // pred_region
      %34 = dma.done [#allocation5], 64
    $region25: #{tpu_custom_call.1} parent=1 // pred_fallthru
      _
    %p35 = scmp.eq.s32.totalorder 0, 0
    // Predicated region
    $region26: #{tpu_custom_call.1} parent=1 // pred_check
      %p36 = pneg %p35
    $region27: #{tpu_custom_call.1} parent=1 // pred_check_branch
      %38 = sbr.rel (%p36) target = $region29
    $region28: #{tpu_custom_call.1} parent=1 // pred_region
      %39 = vst [vmem:[#allocation2] sm:$0xff] 0.0
      %vm40 = vcmask 64512
      %41 = vst.msk [vmem:[#allocation3] sm:$0xff] %vm40, 0.0
    $region29: #{tpu_custom_call.1} parent=1 // pred_fallthru
      _
    %v42 = vld [vmem:[%s0] sm:$0xf]
    %v43 = vld [vmem:[#allocation2] sm:$0xff]
    %v44 = vld [vmem:[%s1] sm:$0xf]
    %v45 = vld [vmem:[%s1 + $0x4] sm:$0xf]
    %v46 = vld [vmem:[%s1 + $0x8] sm:$0xf]
    %v47 = vld [vmem:[%s1 + $0xc] sm:$0xf]
    %v48 = vld [vmem:[%s1 + $0x10] sm:$0xf]
    %v49 = vld [vmem:[%s1 + $0x14] sm:$0xf]
    %v50 = vld [vmem:[%s1 + $0x18] sm:$0xf]
    %v51 = vld [vmem:[%s1 + $0x1c] sm:$0xf]
    %v52 = vld [vmem:[%s1 + $0x20] sm:$0xf]
    %v53 = vld [vmem:[%s1 + $0x24] sm:$0xf]
    %v54 = vld [vmem:[%s1 + $0x28] sm:$0xf]
    %v55 = vld [vmem:[%s1 + $0x2c] sm:$0xf]
    %v56 = vld [vmem:[%s1 + $0x30] sm:$0xf]
    %v57 = vld [vmem:[%s1 + $0x34] sm:$0xf]
    %v58 = vld [vmem:[%s1 + $0x38] sm:$0xf]
    %v59 = vld [vmem:[%s1 + $0x3c] sm:$0xf]
    %v76 = vunpack.c.l.b16 %v44
    %v77 = vunpack.c.l.b16 %v45
    %v78 = vunpack.c.l.b16 %v46
    %v79 = vunpack.c.l.b16 %v47
    %v80 = vunpack.c.l.b16 %v48
    %v81 = vunpack.c.l.b16 %v49
    %v82 = vunpack.c.l.b16 %v50
    %v83 = vunpack.c.l.b16 %v51
    %v84 = vunpack.c.l.b16 %v52
    %v85 = vunpack.c.l.b16 %v53
    %v86 = vunpack.c.l.b16 %v54
    %v87 = vunpack.c.l.b16 %v55
    %v88 = vunpack.c.l.b16 %v56
    %v89 = vunpack.c.l.b16 %v57
    %v90 = vunpack.c.l.b16 %v58
    %v91 = vunpack.c.l.b16 %v59
    %v92 = vpack.c.b16 %v77, %v76
    %v93 = vpack.c.b16 %v79, %v78
    %v94 = vpack.c.b16 %v81, %v80
    %v95 = vpack.c.b16 %v83, %v82
    %v96 = vpack.c.b16 %v85, %v84
    %v97 = vpack.c.b16 %v87, %v86
    %v98 = vpack.c.b16 %v89, %v88
    %v99 = vpack.c.b16 %v91, %v90
    %108 = vmatpush.bf16.msra.mxu0 %v99
    %109 = vmatpush.bf16.msra.mxu0 %v98
    %110 = vmatpush.bf16.msra.mxu0 %v97
    %111 = vmatpush.bf16.msra.mxu0 %v96
    %112 = vmatpush.bf16.msra.mxu0 %v95
    %113 = vmatpush.bf16.msra.mxu0 %v94
    %114 = vmatpush.bf16.msra.mxu0 %v93
    %115 = vmatpush.bf16.msra.mxu0 %v92
    %116 = vmatmul.bf16.gmra.mxu0 %v42
    %v117 = vpop.f32.mrf.mxu0
    %v118 = vadd.f32 0.0, %v117
    %v119 = vpop.f32.mrf.mxu0
    %120 = vdwg.mxu0
    %v121 = vadd.f32 %v43, %v118
    %122 = vst [vmem:[#allocation2] sm:$0xff] %v121
    %v123 = vld [vmem:[#allocation3] sm:$0xff]
    %v124 = vld [vmem:[%s3] sm:$0xf]
    %v125 = vld [vmem:[%s3 + $0x4] sm:$0xf]
    %v126 = vld [vmem:[%s3 + $0x8] sm:$0xf]
    %v127 = vld [vmem:[%s3 + $0xc] sm:$0xf]
    %v128 = vld [vmem:[%s3 + $0x10] sm:$0xf]
    %v129 = vld [vmem:[%s3 + $0x14] sm:$0xf]
    %v130 = vld [vmem:[%s3 + $0x18] sm:$0xf]
    %v131 = vld [vmem:[%s3 + $0x1c] sm:$0xf]
    %v132 = vld [vmem:[%s3 + $0x20] sm:$0xf]
    %v133 = vld [vmem:[%s3 + $0x24] sm:$0xf]
    %v134 = vld [vmem:[%s3 + $0x28] sm:$0xf]
    %v135 = vld [vmem:[%s3 + $0x2c] sm:$0xf]
    %v136 = vld [vmem:[%s3 + $0x30] sm:$0xf]
    %v137 = vld [vmem:[%s3 + $0x34] sm:$0xf]
    %v138 = vld [vmem:[%s3 + $0x38] sm:$0xf]
    %v139 = vld [vmem:[%s3 + $0x3c] sm:$0xf]
    %v156 = vunpack.c.l.b16 %v124
    %v157 = vunpack.c.l.b16 %v125
    %v158 = vunpack.c.l.b16 %v126
    %v159 = vunpack.c.l.b16 %v127
    %v160 = vunpack.c.l.b16 %v128
    %v161 = vunpack.c.l.b16 %v129
    %v162 = vunpack.c.l.b16 %v130
    %v163 = vunpack.c.l.b16 %v131
    %v164 = vunpack.c.l.b16 %v132
    %v165 = vunpack.c.l.b16 %v133
    %v166 = vunpack.c.l.b16 %v134
    %v167 = vunpack.c.l.b16 %v135
    %v168 = vunpack.c.l.b16 %v136
    %v169 = vunpack.c.l.b16 %v137
    %v170 = vunpack.c.l.b16 %v138
    %v171 = vunpack.c.l.b16 %v139
    %v172 = vpack.c.b16 %v157, %v156
    %v173 = vpack.c.b16 %v159, %v158
    %v174 = vpack.c.b16 %v161, %v160
    %v175 = vpack.c.b16 %v163, %v162
    %v176 = vpack.c.b16 %v165, %v164
    %v177 = vpack.c.b16 %v167, %v166
    %v178 = vpack.c.b16 %v169, %v168
    %v179 = vpack.c.b16 %v171, %v170
    %188 = vmatpush.bf16.msra.mxu0 %v179
    %189 = vmatpush.bf16.msra.mxu0 %v178
    %190 = vmatpush.bf16.msra.mxu0 %v177
    %191 = vmatpush.bf16.msra.mxu0 %v176
    %192 = vmatpush.bf16.msra.mxu0 %v175
    %193 = vmatpush.bf16.msra.mxu0 %v174
    %194 = vmatpush.bf16.msra.mxu0 %v173
    %195 = vmatpush.bf16.msra.mxu0 %v172
    %196 = vmatmul.bf16.gmra.mxu0 %v42
    %v197 = vpop.f32.mrf.mxu0
    %v198 = vadd.f32 0.0, %v197
    %v199 = vpop.f32.mrf.mxu0
    %200 = vdwg.mxu0
    %v201 = vadd.f32 %v123, %v198
    %vm202 = vcmask 64512
    %203 = vst.msk [vmem:[#allocation3] sm:$0xff] %vm202, %v201
    // Predicated region
    $region30: #{tpu_custom_call.1} parent=1 // pred_check
      %p204 = pneg %p35
    $region31: #{tpu_custom_call.1} parent=1 // pred_check_branch
      %206 = sbr.rel (%p204) target = $region33
    $region32: #{tpu_custom_call.1} parent=1 // pred_region
      %v207 = vld [vmem:[#allocation3] sm:$0xff]
      %v208 = vld [vmem:[#allocation4] sm:$0xf]
      %v209 = vunpack.c.l.bf16 %v208
      %v211 = vsel %vm202, %v207, 0
      %213 = vmatpush.msra.mxu0 0.0
      %214 = vmatpush.msra.mxu0 0.0
      %215 = vmatpush.msra.mxu0 0.0
      %216 = vmatpush.msra.mxu0 0.0
      %217 = vmatpush.msra.mxu0 0.0
      %218 = vmatpush.msra.mxu0 0.0
      %219 = vmatpush.msra.mxu0 0.0
      %220 = vmatpush.msra.mxu0 0.0
      %221 = vmatpush.msra.mxu0 0.0
      %222 = vmatpush.msra.mxu0 0.0
      %223 = vmatpush.msra.mxu0 0.0
      %224 = vmatpush.msra.mxu0 0.0
      %225 = vmatpush.msra.mxu0 0.0
      %226 = vmatpush.msra.mxu0 0.0
      %227 = vmatpush.msra.mxu0 0.0
      %228 = vmatpush.msra.mxu0 %v209
      %229 = vmatmul.f32.gmra.mxu0 %v211
      %v230 = vpop.f32.mrf.mxu0
      %v231 = vadd.f32 0.0, %v230
      %232 = vdwg.mxu0
      %v233 = vld [vmem:[#allocation2] sm:$0xff]
      %v234 = vld [vmem:[%s2] sm:$0x1]
      %v236 = vperm.slane %v234, 0
      %v238 = vadd.f32 %v233, %v236
      %v239 = vadd.f32 %v238, %v231
      %240 = vst [vmem:[#allocation7] sm:$0xff] %v239
    $region33: #{tpu_custom_call.1} parent=1 // pred_fallthru
      _
    // Predicated region
    $region34: #{tpu_custom_call.1} parent=1 // pred_check
      _
    $region35: #{tpu_custom_call.1} parent=1 // pred_check_branch
      %242 = sbr.rel (0) target = $region37
    $region36: #{tpu_custom_call.1} parent=1 // pred_region
      %244 = vsyncadd [#allocation6], 0
      %s246 = sshll.u32 [#allocation7], 4
      %s247 = int_to_ptr.vmem [resolvable:$true] %s246
      %s248 = sshll.u32 %s5, 4
      %s249 = int_to_ptr.hbm [resolvable:$true] %s248
      %251 = dma.vmem_to_hbm [thread:$0]  %s247, 128, %s249, [#allocation6]
    $region37: #{tpu_custom_call.1} parent=1 // pred_fallthru
      _
    // Predicated region
    $region38: #{tpu_custom_call.1} parent=1 // pred_check
      _
    $region39: #{tpu_custom_call.1} parent=1 // pred_check_branch
      %253 = sbr.rel (0) target = $region41
    $region40: #{tpu_custom_call.1} parent=1 // pred_region
      %255 = dma.done [#allocation6], 128
    $region41: #{tpu_custom_call.1} parent=1 // pred_fallthru
      _
    %256 = vsyncpa [#allocation5], 1
    %257 = vsyncpa [#allocation6], 1

</llo_original>
